<compile_context>
chip_gen: v5e
topology: v5e:2x2
jax: 0.10.0
libtpu: 0.0.40
codegen_flags: <defaults>
</compile_context>

<pallas_src>
import functools
import numpy as np
import jax
import jax.numpy as jnp
from jax import lax
from jax.experimental import pallas as pl
from jax.experimental.pallas import tpu as pltpu


# ----------------------------- small helpers ---------------------------------

def _round_up(x, m):
    return ((x + m - 1) // m) * m


def _pick_tile(seq_len, target):
    """Pick a tile (multiple of 8) and the padded sequence length (multiple of it)."""
    target = max(8, (target // 8) * 8)
    tile = min(target, _round_up(seq_len, 8))
    return tile, _round_up(seq_len, tile)


def _padded_vmem_bytes(entries):
    """entries: iterable of (shape, itemsize, n_buffers); accounts for (8,128) padding."""
    total = 0
    for shape, itemsize, bufs in entries:
        shape = tuple(int(s) for s in shape)
        if len(shape) == 0:
            padded = 1
        elif len(shape) == 1:
            padded = _round_up(shape[0], 128)
        else:
            lead = 1
            for s in shape[:-2]:
                lead *= s
            padded = lead * _round_up(shape[-2], 8) * _round_up(shape[-1], 128)
        total += padded * itemsize * bufs
    return total


def _vmem_capacity_bytes():
    cap = 64 * 1024 * 1024          # conservative default: v7x has 64 MiB per TC
    try:
        info = pltpu.get_tpu_info()
        cap = int(getattr(info, "vmem_capacity_bytes", cap))
    except Exception:
        pass
    return cap


# ----------------------------- projection kernel -----------------------------

def _proj_kernel(x_ref, w_ref, b_ref, o_ref, *, n_head, d_k):
    """y = x @ W + b (one wide lane-dense MXU matmul), relaid head-major once."""
    y = jnp.dot(x_ref[0], w_ref[...], preferred_element_type=jnp.float32)
    y = y + b_ref[...].astype(jnp.float32)                     # (Ts, H*d_k) f32
    ts = y.shape[0]
    # Head-major relayout happens ONCE here (per token), so the attention kernel
    # never crosses (8,128) lane-tile boundaries per kv step.
    y = jnp.transpose(y.reshape(ts, n_head, d_k), (1, 0, 2))   # (H, Ts, d_k)
    o_ref[0] = y.astype(o_ref.dtype)


def _project_heads(x, w, b, *, n_head, d_k, seq_tile, vmem_cap):
    """x: (B, S_pad, D); w: (D, H*d_k); b: (1, H*d_k)  ->  (B, H, S_pad, d_k)."""
    B, S, D = x.shape
    N = n_head * d_k
    isz = x.dtype.itemsize
    est = _padded_vmem_bytes([
        ((seq_tile, D), isz, 2),            # x block (double-buffered)
        ((D, N), isz, 2),                   # weight (default double-buffered)
        ((1, N), isz, 2),                   # bias
        ((n_head, seq_tile, d_k), isz, 2),  # output block
    ])
    vmem_limit = int(min(vmem_cap * 9 // 10, max(32 * 1024 * 1024, est * 2)))
    kernel = functools.partial(_proj_kernel, n_head=n_head, d_k=d_k)
    # TODO(synk): pipeline_mode=pl.Buffered(1) on the (constant) weight/bias specs
    # would single-buffer them; kept at defaults for lowering robustness.
    return pl.pallas_call(
        kernel,
        out_shape=jax.ShapeDtypeStruct((B, n_head, S, d_k), x.dtype),
        grid_spec=pltpu.PrefetchScalarGridSpec(
            num_scalar_prefetch=0,
            grid=(B, S // seq_tile),
            in_specs=[
                pl.BlockSpec((1, seq_tile, D), lambda b_, s_: (b_, s_, 0)),
                pl.BlockSpec((D, N), lambda b_, s_: (0, 0)),
                pl.BlockSpec((1, N), lambda b_, s_: (0, 0)),
            ],
            out_specs=pl.BlockSpec((1, n_head, seq_tile, d_k),
                                   lambda b_, s_: (b_, 0, s_, 0)),
        ),
        compiler_params=pltpu.CompilerParams(
            dimension_semantics=("parallel", "parallel"),
            vmem_limit_bytes=vmem_limit),
    )(x, w, b)


# ----------------------------- flash attention kernel ------------------------

def _flash_mha_kernel(q_ref, k_ref, v_ref, o_ref, m_sc, l_sc, acc_sc,
                      *, kv_len, kv_tile, needs_kv_mask):
    """Grid = (batch, q_blocks, kv_blocks); kv_blocks is the reduction axis.

    q_ref/k_ref/v_ref: (1, H, T, d_k) head-major, already projected (Q pre-scaled).
    """
    ki = pl.program_id(2)
    mm_dtype = q_ref.dtype          # bf16-in / f32-accumulate by default

    @pl.when(ki == 0)
    def _init():
        m_sc[...] = jnp.full_like(m_sc, -jnp.inf)
        l_sc[...] = jnp.zeros_like(l_sc)
        acc_sc[...] = jnp.zeros_like(acc_sc)

    q = q_ref[0]                    # (H, Tq, d_k)  (1/sqrt(d_k) folded in)
    k = k_ref[0]                    # (H, Tk, d_k)
    v = v_ref[0]                    # (H, Tk, d_k)

    # Batched over heads: one MXU push stream, no per-head lane slicing.
    s = jnp.einsum('hqd,hkd->hqk', q, k,
                   preferred_element_type=jnp.float32)         # (H, Tq, Tk) f32

    if needs_kv_mask:
        col = lax.broadcasted_iota(jnp.int32, s.shape, 2) + ki * kv_tile
        s = jnp.where(col < kv_len, s, -1e30)

    m_prev = m_sc[...]                                          # (H, Tq, 1)
    m_new = jnp.maximum(m_prev, jnp.max(s, axis=-1, keepdims=True))
    alpha = jnp.exp(m_prev - m_new)
    p = jnp.exp(s - m_new)                                      # (H, Tq, Tk) f32
    l_sc[...] = alpha * l_sc[...] + jnp.sum(p, axis=-1, keepdims=True)
    acc_sc[...] = alpha * acc_sc[...] + jnp.einsum(
        'hqk,hkd->hqd', p.astype(mm_dtype), v, preferred_element_type=jnp.float32)
    m_sc[...] = m_new

    @pl.when(ki == pl.num_programs(2) - 1)
    def _finalize():
        inv_l = pl.reciprocal(l_sc[...], approx=True)           # (H, Tq, 1)
        out = acc_sc[...] * inv_l                                # (H, Tq, d_k)
        h, tq, dk = out.shape
        # One lane-dense store of the concatenated heads in the final layout.
        out = jnp.transpose(out, (1, 0, 2)).reshape(tq, h * dk)
        o_ref[0] = out.astype(o_ref.dtype)


# ----------------------------- public wrapper ---------------------------------

def multihead_attention(inp_q, inp_k, inp_v, Wq, bq, Wk, bk, Wv, bv,
                        *, mask=None, q_block=256, kv_block=512,
                        compute_dtype=jnp.bfloat16):
    """Pallas multi-head attention matching the PyTorch module (mask=None path).

    inp_q: (B, Sq, D); inp_k/inp_v: (B, Sk, D)
    Wq/Wk/Wv: (H, D, d_k)  (already transposed vs. nn.Linear, i.e. x @ W + b)
    bq/bk/bv: (H, 1, d_k)
    returns: (B, Sq, H*d_k)  (== torch.cat over heads on the last dim)
    """
    if mask is not None:
        # TODO(synk): masked_fill(mask == 0, -1e9) path not implemented.
        raise NotImplementedError("mask is not supported by this Pallas kernel")

    B, Sq, D = inp_q.shape
    _, Sk, _ = inp_k.shape
    H, _, d_k = Wq.shape
    N = H * d_k
    out_dtype = inp_q.dtype
    cdt = jnp.dtype(compute_dtype)

    # Fuse heads: (H, D, d_k) -> (D, H*d_k); fold 1/sqrt(d_k) into the Q projection.
    def stack_w(W):
        return jnp.transpose(W, (1, 0, 2)).reshape(D, N)

    def stack_b(b):
        return b.reshape(1, N)

    scale = 1.0 / np.sqrt(d_k)
    Wq_s = (stack_w(Wq) * scale).astype(cdt)
    bq_s = (stack_b(bq) * scale).astype(cdt)
    Wk_s = stack_w(Wk).astype(cdt)
    bk_s = stack_b(bk).astype(cdt)
    Wv_s = stack_w(Wv).astype(cdt)
    bv_s = stack_b(bv).astype(cdt)

    # ---- generation-aware tiling (v7x: 64 MiB VMEM/TC; v5e/v6e: 128 MiB) ----
    vmem_cap = _vmem_capacity_bytes()
    budget = (vmem_cap * 3) // 5               # leave headroom for compiler temps

    Tq, Sq_pad = _pick_tile(Sq, q_block)
    Tk, Sk_pad = _pick_tile(Sk, kv_block)

    csz = cdt.itemsize
    osz = jnp.dtype(out_dtype).itemsize

    def attn_est(tq, tk):
        # NOTE: m/l scratch pads its last dim 1 -> 128 lanes; could be packed on v7x.
        return _padded_vmem_bytes([
            ((H, tq, d_k), csz, 2),        # q block (double-buffered)
            ((H, tk, d_k), csz, 2 * 2),    # k + v blocks
            ((tq, N), osz, 2),             # output block
            ((H, tq, 1), 4, 2),            # m + l scratch
            ((H, tq, d_k), 4, 1),          # acc scratch
        ])

    while attn_est(Tq, Tk) > budget and Tk > 128:
        Tk = max(128, Tk // 2)
        Sk_pad = _round_up(Sk, Tk)
    while attn_est(Tq, Tk) > budget and Tq > 128:
        Tq = max(128, Tq // 2)
        Sq_pad = _round_up(Sq, Tq)

    # v7x megacore: keep the parallel extent even so both TensorCores get work.
    if (B * (Sq_pad // Tq)) % 2 == 1 and Tq % 16 == 0:
        Tq //= 2

    # ---- pad sequences (zeros) so every tile is full; padded KV cols are masked ----
    xq = inp_q.astype(cdt)
    xk = inp_k.astype(cdt)
    xv = inp_v.astype(cdt)
    if Sq_pad != Sq:
        xq = jnp.pad(xq, ((0, 0), (0, Sq_pad - Sq), (0, 0)))
    if Sk_pad != Sk:
        xk = jnp.pad(xk, ((0, 0), (0, Sk_pad - Sk), (0, 0)))
        xv = jnp.pad(xv, ((0, 0), (0, Sk_pad - Sk), (0, 0)))

    # ---- hoisted projections: one wide matmul each, head-major bf16 outputs ----
    qp = _project_heads(xq, Wq_s, bq_s, n_head=H, d_k=d_k, seq_tile=Tq, vmem_cap=vmem_cap)
    kp = _project_heads(xk, Wk_s, bk_s, n_head=H, d_k=d_k, seq_tile=Tk, vmem_cap=vmem_cap)
    vp = _project_heads(xv, Wv_s, bv_s, n_head=H, d_k=d_k, seq_tile=Tk, vmem_cap=vmem_cap)

    grid = (B, Sq_pad // Tq, Sk_pad // Tk)
    needs_kv_mask = (Sk_pad != Sk)
    vmem_limit = int(min(vmem_cap * 9 // 10,
                         max(32 * 1024 * 1024, attn_est(Tq, Tk) * 2)))

    kernel = functools.partial(_flash_mha_kernel, kv_len=Sk, kv_tile=Tk,
                               needs_kv_mask=needs_kv_mask)

    out = pl.pallas_call(
        kernel,
        out_shape=jax.ShapeDtypeStruct((B, Sq_pad, N), out_dtype),
        grid_spec=pltpu.PrefetchScalarGridSpec(
            num_scalar_prefetch=0,
            grid=grid,
            in_specs=[
                pl.BlockSpec((1, H, Tq, d_k), lambda b_, qi, ki: (b_, 0, qi, 0)),
                pl.BlockSpec((1, H, Tk, d_k), lambda b_, qi, ki: (b_, 0, ki, 0)),
                pl.BlockSpec((1, H, Tk, d_k), lambda b_, qi, ki: (b_, 0, ki, 0)),
            ],
            out_specs=pl.BlockSpec((1, Tq, N), lambda b_, qi, ki: (b_, qi, 0)),
            scratch_shapes=[
                pltpu.VMEM((H, Tq, 1), jnp.float32),    # running max
                pltpu.VMEM((H, Tq, 1), jnp.float32),    # running denominator
                pltpu.VMEM((H, Tq, d_k), jnp.float32),  # running output numerator
            ]),
        compiler_params=pltpu.CompilerParams(
            dimension_semantics=("parallel", "parallel", "arbitrary"),
            vmem_limit_bytes=vmem_limit),
    )(qp, kp, vp)

    if Sq_pad != Sq:
        out = out[:, :Sq, :]
    return out


# ----------------------------- pure-JAX reference -----------------------------

def reference_mha(inp_q, inp_k, inp_v, Wq, bq, Wk, bk, Wv, bv):
    """Pure-JAX f32 reference matching the PyTorch module (mask=None)."""
    H, D, d_k = Wq.shape
    B, Sq, _ = inp_q.shape
    q = jnp.einsum('bsd,hde->bhse', inp_q, Wq) + bq[None]
    k = jnp.einsum('bsd,hde->bhse', inp_k, Wk) + bk[None]
    v = jnp.einsum('bsd,hde->bhse', inp_v, Wv) + bv[None]
    s = jnp.einsum('bhqe,bhke->bhqk', q, k) / np.sqrt(d_k)
    w = jax.nn.softmax(s, axis=-1)
    o = jnp.einsum('bhqk,bhke->bhqe', w, v)
    return jnp.transpose(o, (0, 2, 1, 3)).reshape(B, Sq, H * d_k)


if __name__ == "__main__":
    # Small shapes consistent with the module.
    B, S, d_model, n_head = 2, 8, 32, 4
    d_k = d_model // n_head

    key = jax.random.PRNGKey(0)
    keys = jax.random.split(key, 9)

    inp_q = jax.random.normal(keys[0], (B, S, d_model), jnp.float32)
    inp_k = jax.random.normal(keys[1], (B, S, d_model), jnp.float32)
    inp_v = jax.random.normal(keys[2], (B, S, d_model), jnp.float32)

    # Deterministic "nn.Linear"-style init, stacked per head.
    lim = 1.0 / np.sqrt(d_model)
    Wq = jax.random.uniform(keys[3], (n_head, d_model, d_k), jnp.float32, -lim, lim)
    Wk = jax.random.uniform(keys[4], (n_head, d_model, d_k), jnp.float32, -lim, lim)
    Wv = jax.random.uniform(keys[5], (n_head, d_model, d_k), jnp.float32, -lim, lim)
    bq = jax.random.uniform(keys[6], (n_head, 1, d_k), jnp.float32, -lim, lim)
    bk = jax.random.uniform(keys[7], (n_head, 1, d_k), jnp.float32, -lim, lim)
    bv = jax.random.uniform(keys[8], (n_head, 1, d_k), jnp.float32, -lim, lim)

    # Test 1: tile-aligned sequence length.
    out = multihead_attention(inp_q, inp_k, inp_v, Wq, bq, Wk, bk, Wv, bv)
    out = jax.block_until_ready(out)
    ref = reference_mha(inp_q, inp_k, inp_v, Wq, bq, Wk, bk, Wv, bv)
    # Tolerance accounts for bf16 matmul operands and the approx (EUP) reciprocal.
    np.testing.assert_allclose(np.asarray(out), np.asarray(ref), rtol=2e-2, atol=2e-2)

    # Test 2: awkward sequence length (exercises padding + KV masking).
    S2 = 12
    k2 = jax.random.split(jax.random.PRNGKey(1), 3)
    inp_q2 = jax.random.normal(k2[0], (B, S2, d_model), jnp.float32)
    inp_k2 = jax.random.normal(k2[1], (B, S2, d_model), jnp.float32)
    inp_v2 = jax.random.normal(k2[2], (B, S2, d_model), jnp.float32)
    out2 = multihead_attention(inp_q2, inp_k2, inp_v2, Wq, bq, Wk, bk, Wv, bv)
    out2 = jax.block_until_ready(out2)
    ref2 = reference_mha(inp_q2, inp_k2, inp_v2, Wq, bq, Wk, bk, Wv, bv)
    np.testing.assert_allclose(np.asarray(out2), np.asarray(ref2), rtol=2e-2, atol=2e-2)

    print("KERNEL_OK")
</pallas_src>

<mosaic_0001>
module attributes {stable_mosaic.version = 11 : i64} {
  func.func @_proj_kernel(%arg0: i32, %arg1: i32, %arg2: memref<1x8x32xbf16, #tpu.memory_space<vmem>>, %arg3: memref<32x32xbf16, #tpu.memory_space<vmem>>, %arg4: memref<1x32xbf16, #tpu.memory_space<vmem>>, %arg5: memref<1x4x8x8xbf16, #tpu.memory_space<vmem>>) attributes {dimension_semantics = [#tpu.dimension_semantics<parallel>, #tpu.dimension_semantics<parallel>], iteration_bounds = array<i64: 2, 1>, scalar_prefetch = 0 : i64, scratch_operands = 0 : i64, tpu.core_type = #tpu.core_type<tc>, window_params = [{transform_indices = @transform_0, window_bounds = array<i64: 1, 8, 32>}, {pipeline_mode = #tpu.pipeline_mode<synchronous>, transform_indices = @transform_1, window_bounds = array<i64: 32, 32>}, {pipeline_mode = #tpu.pipeline_mode<synchronous>, transform_indices = @transform_2, window_bounds = array<i64: 1, 32>}, {transform_indices = @transform_3, window_bounds = array<i64: 1, 4, 8, 8>}]} {
    %c0 = arith.constant 0 : index
    %c0_0 = arith.constant 0 : index
    %c0_1 = arith.constant 0 : index
    %0 = vector.load %arg2[%c0, %c0_0, %c0_1] : memref<1x8x32xbf16, #tpu.memory_space<vmem>>, vector<1x8x32xbf16>
    %1 = vector.shape_cast %0 : vector<1x8x32xbf16> to vector<8x32xbf16>
    %c0_2 = arith.constant 0 : index
    %c0_3 = arith.constant 0 : index
    %2 = vector.load %arg3[%c0_2, %c0_3] : memref<32x32xbf16, #tpu.memory_space<vmem>>, vector<32x32xbf16>
    %cst = arith.constant dense<0.000000e+00> : vector<8x32xf32>
    %3 = tpu.matmul %1, %2, %cst {dimension_numbers = #tpu.dot_dimension_numbers<[1], [0], [0], [1], [0, 0, 1, 1], [], []>} : vector<8x32xbf16>, vector<32x32xbf16>, vector<8x32xf32> -> vector<8x32xf32>
    %c0_4 = arith.constant 0 : index
    %c0_5 = arith.constant 0 : index
    %4 = vector.load %arg4[%c0_4, %c0_5] : memref<1x32xbf16, #tpu.memory_space<vmem>>, vector<1x32xbf16>
    %5 = arith.extf %4 : vector<1x32xbf16> to vector<1x32xf32>
    %6 = vector.broadcast %5 : vector<1x32xf32> to vector<8x32xf32>
    %7 = arith.addf %3, %6 : vector<8x32xf32>
    %8 = vector.shape_cast %7 : vector<8x32xf32> to vector<8x4x8xf32>
    %9 = tpu.transpose %8, [1, 0, 2] : vector<8x4x8xf32> -> vector<4x8x8xf32>
    %10 = arith.truncf %9 : vector<4x8x8xf32> to vector<4x8x8xbf16>
    %c0_6 = arith.constant 0 : index
    %c0_7 = arith.constant 0 : index
    %c0_8 = arith.constant 0 : index
    %c0_9 = arith.constant 0 : index
    %11 = vector.load %arg5[%c0_6, %c0_7, %c0_8, %c0_9] : memref<1x4x8x8xbf16, #tpu.memory_space<vmem>>, vector<1x4x8x8xbf16>
    %12 = vector.shape_cast %11 : vector<1x4x8x8xbf16> to vector<4x8x8xbf16>
    %13 = vector.shape_cast %10 : vector<4x8x8xbf16> to vector<1x4x8x8xbf16>
    tpu.vector_store %arg5[%c0_6, %c0_7, %c0_8, %c0_9], %13 {strides = array<i32>} : memref<1x4x8x8xbf16, #tpu.memory_space<vmem>>, vector<1x4x8x8xbf16>,
    return
  }
  func.func @transform_0(%arg0: i32, %arg1: i32) -> (i32, i32, i32) {
    %c0_i32 = arith.constant 0 : i32
    %c0_i32_0 = arith.constant 0 : i32
    return %arg0, %arg1, %c0_i32 : i32, i32, i32
  }
  func.func @transform_1(%arg0: i32, %arg1: i32) -> (i32, i32) {
    %c0_i32 = arith.constant 0 : i32
    %c0_i32_0 = arith.constant 0 : i32
    %c0_i32_1 = arith.constant 0 : i32
    return %c0_i32, %c0_i32_0 : i32, i32
  }
  func.func @transform_2(%arg0: i32, %arg1: i32) -> (i32, i32) {
    %c0_i32 = arith.constant 0 : i32
    %c0_i32_0 = arith.constant 0 : i32
    %c0_i32_1 = arith.constant 0 : i32
    return %c0_i32, %c0_i32_0 : i32, i32
  }
  func.func @transform_3(%arg0: i32, %arg1: i32) -> (i32, i32, i32, i32) {
    %c0_i32 = arith.constant 0 : i32
    %c0_i32_0 = arith.constant 0 : i32
    %c0_i32_1 = arith.constant 0 : i32
    return %arg0, %c0_i32, %arg1, %c0_i32_0 : i32, i32, i32, i32
  }
}

</mosaic_0001>

<llo_original>
// kernel: tpu_custom_call.1
$region0: #{tpu_custom_call.1}
  #allocation0 [shape = 'u32[]', space=smem, size = 0x4, offset = 0x4, fixed_abs, tag = 'smem constant byte address 0x4 - core index']
  #allocation1 [shape = 'u32[72,128]{1,0:T(1,128)}', space=vmem, size = 0x9000, scoped, tag = 'internal scratch']
  %s0 = inlined_call_operand.hbm [shape: bf16[2,8,32], index: 0, kind: input, shape index: {}]
  %s1 = inlined_call_operand.hbm [shape: bf16[32,32], index: 1, kind: input, shape index: {}]
  %s2 = inlined_call_operand.vmem [shape: bf16[1,32], index: 2, kind: input, shape index: {}]
  %s3 = inlined_call_operand.hbm [shape: bf16[2,4,8,8], index: 3, kind: output, shape index: {}]
  %s4 = sld [smem:[#allocation0]]
  $region53: #{tpu_custom_call.1} parent=0
    _
  %s6 = ssub.s32 1, %s4
  %s7 = scalar_select 0, %s6, %s4
  $region1: #{tpu_custom_call.1} parent=0
    #allocation2 [shape = 'u8[4096]{0}', space=vmem, size = 0x1000, scoped, tag = 'input window, operand 0']
    #allocation3 [shape = 's32[2]{0}', space=sflag, size = 0x8, scoped, tag = 'scoped memory for tpu_custom_call.1']
    #allocation4 [shape = 's32[2]{0}', space=sflag, size = 0x8, scoped, tag = 'scoped memory for tpu_custom_call.1']
    #allocation5 [shape = 'u8[8192]{0}', space=vmem, size = 0x2000, scoped, tag = 'input window, operand 1, single buffered']
    #allocation6 [shape = 's32[1]{0}', space=sflag, size = 0x4, scoped, tag = 'scoped memory for tpu_custom_call.1']
    #allocation7 [shape = 'u8[16384]{0}', space=vmem, size = 0x4000, scoped, tag = 'output window, operand 0']
    %8 = vsyncpa [#allocation3], 0
    %s9 = scalar_lea.sflag [#allocation3], 1
    %10 = vsyncpa %s9, 0
    %11 = vsyncpa [#allocation6], 0
    %12 = vsyncpa [#allocation4], 0
    %s13 = scalar_lea.sflag [#allocation4], 1
    %14 = vsyncpa %s13, 0
    loop: start=0, step=1, limit=4
    $region2: #{tpu_custom_call.1} parent=1 // loop_pre_header
      _
    $region3: #{tpu_custom_call.1} parent=1 // loop_header
      %s16 = sphi 0, %s20
      %p17 = scmp.ge.s32.totalorder %s16, 4
      %s23 = sphi 0, %s35
      %s24 = sphi 0, %s31
      %s25 = sphi 0, %s23
      %s26 = sphi 0, %s24
      %s27 = sphi 0, %s25
      %s28 = sphi 0, %s26
      %s40 = sphi 0, %s42
      %s43 = sphi 0, %s40
      %s44 = sphi 0, %s43
      %s60 = sphi 0, %s44
      %s64 = sphi 0, %s64
      %s66 = sphi 0, %s64
      %s67 = sphi 0, %s66
      %s81 = sphi 0, %s67
      %s85 = sphi 0, %s85
      %s87 = sphi 0, %s85
      %s88 = sphi 0, %s87
      %s102 = sphi 0, %s88
      %s110 = sphi 0, %s112
      %s113 = sphi 0, %s110
      %s114 = sphi 0, %s113
      %s130 = sphi 0, %s114
    $region4: #{tpu_custom_call.1} parent=1 // loop_header_branch
      %19 = sbr.rel (%p17) target = $region8
    $region5: #{tpu_custom_call.1} parent=1 // loop_body
      %s21 = ssub.s32 %s16, 1
      %s22 = ssub.s32 %s16, 2
      %s29 = sadd.s32 1, %s24
      %p30 = scmp.ge.s32.totalorder %s29, 1
      %s31 = scalar_select %p30, 0, %s29
      %s32 = sadd.s32 1, %s23
      %s33 = scalar_select %p30, %s32, %s23
      %p34 = scmp.ge.s32.totalorder %s33, 2
      %s35 = scalar_select %p34, 0, %s33
      %s36 = ssub.s32 %s23, %s35
      %s37 = ssub.s32 %s24, %s31
      %s38 = sor.u32 %s36, %s37
      %p39 = scmp.eq.s32.totalorder %s38, 0
      %s41 = sadd.s32 %s40, 1
      %s42 = scalar_select %p39, %s40, %s41
      %p45 = pneg %p39
      %p46 = scmp.eq.s32.totalorder %s16, 1
      %p47 = por %p45, %p46
      %p48 = scmp.ne.s32.totalorder %s40, %s43
      %p49 = scmp.eq.s32.totalorder %s16, 0
      %p50 = por %p48, %p49
      %p51 = scmp.ne.s32.totalorder %s40, %s43
      %p52 = scmp.eq.s32.totalorder %s21, 1
      %p53 = por %p51, %p52
      %p54 = scmp.ne.s32.totalorder %s43, %s44
      %p55 = scmp.eq.s32.totalorder %s21, 0
      %p56 = por %p54, %p55
      %p57 = scmp.ne.s32.totalorder %s43, %s44
      %p58 = scmp.eq.s32.totalorder %s22, 1
      %p59 = por %p57, %p58
      %p61 = scmp.ne.s32.totalorder %s44, %s60
      %p62 = scmp.eq.s32.totalorder %s22, 0
      %p63 = por %p61, %p62
      %s65 = sadd.s32 %s64, 1
      %p68 = scmp.eq.s32.totalorder %s16, 1
      %p69 = scmp.ne.s32.totalorder %s64, %s66
      %p70 = scmp.eq.s32.totalorder %s16, 0
      %p71 = por %p69, %p70
      %p72 = scmp.ne.s32.totalorder %s64, %s66
      %p73 = scmp.eq.s32.totalorder %s21, 1
      %p74 = por %p72, %p73
      %p75 = scmp.ne.s32.totalorder %s66, %s67
      %p76 = scmp.eq.s32.totalorder %s21, 0
      %p77 = por %p75, %p76
      %p78 = scmp.ne.s32.totalorder %s66, %s67
      %p79 = scmp.eq.s32.totalorder %s22, 1
      %p80 = por %p78, %p79
      %p82 = scmp.ne.s32.totalorder %s67, %s81
      %p83 = scmp.eq.s32.totalorder %s22, 0
      %p84 = por %p82, %p83
      %s86 = sadd.s32 %s85, 1
      %p89 = scmp.eq.s32.totalorder %s16, 1
      %p90 = scmp.ne.s32.totalorder %s85, %s87
      %p91 = scmp.eq.s32.totalorder %s16, 0
      %p92 = por %p90, %p91
      %p93 = scmp.ne.s32.totalorder %s85, %s87
      %p94 = scmp.eq.s32.totalorder %s21, 1
      %p95 = por %p93, %p94
      %p96 = scmp.ne.s32.totalorder %s87, %s88
      %p97 = scmp.eq.s32.totalorder %s21, 0
      %p98 = por %p96, %p97
      %p99 = scmp.ne.s32.totalorder %s87, %s88
      %p100 = scmp.eq.s32.totalorder %s22, 1
      %p101 = por %p99, %p100
      %p103 = scmp.ne.s32.totalorder %s88, %s102
      %p104 = scmp.eq.s32.totalorder %s22, 0
      %p105 = por %p103, %p104
      %s106 = ssub.s32 %s23, %s35
      %s107 = ssub.s32 %s24, %s31
      %s108 = sor.u32 %s106, %s107
      %p109 = scmp.eq.s32.totalorder %s108, 0
      %s111 = sadd.s32 %s110, 1
      %s112 = scalar_select %p109, %s110, %s111
      %p115 = pneg %p109
      %p116 = scmp.eq.s32.totalorder %s16, 1
      %p117 = por %p115, %p116
      %p118 = scmp.ne.s32.totalorder %s110, %s113
      %p119 = scmp.eq.s32.totalorder %s16, 0
      %p120 = por %p118, %p119
      %p121 = scmp.ne.s32.totalorder %s110, %s113
      %p122 = scmp.eq.s32.totalorder %s21, 1
      %p123 = por %p121, %p122
      %p124 = scmp.ne.s32.totalorder %s113, %s114
      %p125 = scmp.eq.s32.totalorder %s21, 0
      %p126 = por %p124, %p125
      %p127 = scmp.ne.s32.totalorder %s113, %s114
      %p128 = scmp.eq.s32.totalorder %s22, 1
      %p129 = por %p127, %p128
      %p131 = scmp.ne.s32.totalorder %s114, %s130
      %p132 = scmp.eq.s32.totalorder %s22, 0
      %p133 = por %p131, %p132
      %p134 = scmp.le.s32.totalorder 1, %s16
      %p135 = scmp.lt.s32.totalorder %s16, 3
      %p136 = pnand %p134, %p135
      %p137 = pneg %p136
      // Predicated region
      $region9: #{tpu_custom_call.1} parent=5 // pred_check
        _
      $region10: #{tpu_custom_call.1} parent=5 // pred_check_branch
        %139 = sbr.rel (%p136) target = $region12
      $region11: #{tpu_custom_call.1} parent=5 // pred_region
        %s140 = ssub.s32 %s16, 1
        // Predicated region
        $region13: #{tpu_custom_call.1} parent=11 // pred_check
          %p141 = pneg %p77
        $region14: #{tpu_custom_call.1} parent=11 // pred_check_branch
          %143 = sbr.rel (%p141) target = $region16
        $region15: #{tpu_custom_call.1} parent=11 // pred_region
          %145 = vsyncadd [#allocation6], 0
          %s146 = sshll.u32 %s1, 4
          %s147 = int_to_ptr.hbm [resolvable:$true] %s146
          %s148 = sshll.u32 [#allocation5], 4
          %s149 = int_to_ptr.vmem [resolvable:$true] %s148
          %154 = dma.hbm_to_vmem [thread:$0]  %s147, 256, %s149, [#allocation6], 64, 64, 4
        $region16: #{tpu_custom_call.1} parent=11 // pred_fallthru
          _
        // Predicated region
        $region17: #{tpu_custom_call.1} parent=11 // pred_check
          %p155 = pneg %p98
        $region18: #{tpu_custom_call.1} parent=11 // pred_check_branch
          %157 = sbr.rel (%p155) target = $region20
        $region19: #{tpu_custom_call.1} parent=11 // pred_region
          _
        $region20: #{tpu_custom_call.1} parent=11 // pred_fallthru
          _
      $region12: #{tpu_custom_call.1} parent=5 // pred_fallthru
        _
      %p158 = scmp.lt.s32.totalorder %s16, 2
      // Predicated region
      $region21: #{tpu_custom_call.1} parent=5 // pred_check
        %p159 = pneg %p158
      $region22: #{tpu_custom_call.1} parent=5 // pred_check_branch
        %161 = sbr.rel (%p159) target = $region24
      $region23: #{tpu_custom_call.1} parent=5 // pred_region
        // Predicated region
        $region25: #{tpu_custom_call.1} parent=23 // pred_check
          %p162 = pneg %p50
        $region26: #{tpu_custom_call.1} parent=23 // pred_check_branch
          %164 = sbr.rel (%p162) target = $region28
        $region27: #{tpu_custom_call.1} parent=23 // pred_region
          %s165 = sand.u32 %s40, 1
          %s166 = scalar_lea.sflag [#allocation3], %s165
          %s167 = sand.u32 %s40, 1
          %s168 = smul.addr %s167, 4
          %s169 = scalar_lea.vmem [#allocation2], %s168
          %171 = vsyncadd %s166, 0
          %s172 = sadd.s32 %s24, %s23
          %s173 = smul.addr %s172, 4
          %s174 = scalar_lea.hbm %s0, %s173
          %s176 = sshll.u32 %s174, 4
          %s177 = int_to_ptr.hbm [resolvable:$true] %s176
          %s178 = sshll.u32 %s169, 4
          %s179 = int_to_ptr.vmem [resolvable:$true] %s178
          %181 = dma.hbm_to_vmem [thread:$0]  %s177, 64, %s179, %s166
        $region28: #{tpu_custom_call.1} parent=23 // pred_fallthru
          _
      $region24: #{tpu_custom_call.1} parent=5 // pred_fallthru
        _
      %p182 = scmp.le.s32.totalorder 1, %s16
      %p183 = scmp.lt.s32.totalorder %s16, 3
      %p184 = pnand %p182, %p183
      %p185 = pneg %p184
      // Predicated region
      $region29: #{tpu_custom_call.1} parent=5 // pred_check
        _
      $region30: #{tpu_custom_call.1} parent=5 // pred_check_branch
        %187 = sbr.rel (%p184) target = $region32
      $region31: #{tpu_custom_call.1} parent=5 // pred_region
        %s188 = ssub.s32 %s16, 1
        %s189 = sand.u32 %s43, 1
        %s190 = scalar_lea.sflag [#allocation3], %s189
        %s191 = sand.u32 %s43, 1
        %s192 = smul.addr %s191, 4
        %s193 = scalar_lea.vmem [#allocation2], %s192
        // Predicated region
        $region33: #{tpu_custom_call.1} parent=31 // pred_check
          %p194 = pneg %p56
        $region34: #{tpu_custom_call.1} parent=31 // pred_check_branch
          %196 = sbr.rel (%p194) target = $region36
        $region35: #{tpu_custom_call.1} parent=31 // pred_region
          %198 = dma.done %s190, 64
        $region36: #{tpu_custom_call.1} parent=31 // pred_fallthru
          _
        // Predicated region
        $region37: #{tpu_custom_call.1} parent=31 // pred_check
          %p199 = pneg %p77
        $region38: #{tpu_custom_call.1} parent=31 // pred_check_branch
          %201 = sbr.rel (%p199) target = $region40
        $region39: #{tpu_custom_call.1} parent=31 // pred_region
          %203 = dma.done [#allocation6], 256
        $region40: #{tpu_custom_call.1} parent=31 // pred_fallthru
          _
        %s204 = sand.u32 %s43, 1
        %s205 = scalar_lea.sflag [#allocation3], %s204
        %s206 = sand.u32 %s43, 1
        %s207 = smul.addr %s206, 4
        %s208 = scalar_lea.vmem [#allocation2], %s207
        %p209 = pneg %p56
        %p210 = pneg %p53
        %p211 = pneg %p77
        %p212 = pneg %p74
        %p213 = pneg %p98
        %p214 = pneg %p95
        %p215 = pneg %p126
        %p216 = pneg %p123
        %s217 = sand.u32 %s113, 1
        %s218 = scalar_lea.sflag [#allocation4], %s217
        %s219 = sand.u32 %s113, 1
        %s220 = smul.addr %s219, 16
        %s221 = scalar_lea.vmem [#allocation7], %s220
        %v223 = vld [vmem:[%s193] sm:$0xf]
        %v224 = vld [vmem:[#allocation5] sm:$0xf]
        %v225 = vld [vmem:[#allocation5 + $0x4] sm:$0xf]
        %v226 = vld [vmem:[#allocation5 + $0x8] sm:$0xf]
        %v227 = vld [vmem:[#allocation5 + $0xc] sm:$0xf]
        %v228 = vld [vmem:[%s2] sm:$0x1]
        %v229 = vunpack.c.l.bf16 %v228
        %v230 = vperm.slane %v229, 0
        %v235 = vunpack.c.l.b16 %v224
        %v236 = vunpack.c.l.b16 %v225
        %v237 = vunpack.c.l.b16 %v226
        %v238 = vunpack.c.l.b16 %v227
        %v239 = vpack.c.b16 %v236, %v235
        %v240 = vpack.c.b16 %v238, %v237
        %vm243 = vcmask 261120
        %v245 = vsel %vm243, %v223, 0
        %247 = vmatpush.bf16.msra.mxu0 0
        %248 = vmatpush.bf16.msra.mxu0 0
        %249 = vmatpush.bf16.msra.mxu0 0
        %250 = vmatpush.bf16.msra.mxu0 0
        %251 = vmatpush.bf16.msra.mxu0 0
        %252 = vmatpush.bf16.msra.mxu0 0
        %253 = vmatpush.bf16.msra.mxu0 %v240
        %254 = vmatpush.bf16.msra.mxu0 %v239
        %255 = vmatmul.bf16.gmra.mxu0 %v245
        %v256 = vpop.f32.mrf.mxu0
        %v257 = vadd.f32 %v230, %v256
        %v258 = vpop.f32.mrf.mxu0
        %259 = vdwg.mxu0
        %261 = vrot.lane.b32.xlu0 %v257, 120
        %v262 = vpop.permute.xlu0 %261
        %264 = vrot.lane.b32.xlu0 %v257, 112
        %v265 = vpop.permute.xlu0 %264
        %267 = vrot.lane.b32.xlu0 %v257, 104
        %v268 = vpop.permute.xlu0 %267
        %v270 = vrot.slane %v265, 4
        %vm271 = vcmask 1047556
        %v272 = vsel %vm271, %v270, %v257
        %v273 = vrot.slane %v257, 4
        %v274 = vsel %vm271, %v265, %v273
        %v276 = vunpack.c.l.s4 1983009808
        %v277 = vunpack.c.0.s8 %v276
        %v278 = vperm.slane %v272, %v277
        %v280 = vunpack.c.l.s4 1983009808
        %v281 = vunpack.c.0.s8 %v280
        %v282 = vperm.slane %v274, %v281
        %v283 = vrot.slane %v268, 4
        %v284 = vsel %vm271, %v283, %v262
        %v285 = vrot.slane %v262, 4
        %v286 = vsel %vm271, %v268, %v285
        %v288 = vunpack.c.l.s4 1983009808
        %v289 = vunpack.c.0.s8 %v288
        %v290 = vperm.slane %v284, %v289
        %v292 = vunpack.c.l.s4 1983009808
        %v293 = vunpack.c.0.s8 %v292
        %v294 = vperm.slane %v286, %v293
        %v295 = vrot.slane %v290, 4
        %v296 = vsel %vm271, %v295, %v278
        %v297 = vrot.slane %v278, 4
        %v298 = vsel %vm271, %v290, %v297
        %v300 = vunpack.c.l.s4 1934713408
        %v301 = vunpack.c.0.s8 %v300
        %v302 = vperm.slane %v296, %v301
        %v304 = vunpack.c.l.s4 1934713408
        %v305 = vunpack.c.0.s8 %v304
        %v306 = vperm.slane %v298, %v305
        %v307 = vrot.slane %v294, 4
        %v308 = vsel %vm271, %v307, %v282
        %v309 = vrot.slane %v282, 4
        %v310 = vsel %vm271, %v294, %v309
        %v312 = vunpack.c.l.s4 1934713408
        %v313 = vunpack.c.0.s8 %v312
        %v314 = vperm.slane %v308, %v313
        %v316 = vunpack.c.l.s4 1934713408
        %v317 = vunpack.c.0.s8 %v316
        %v318 = vperm.slane %v310, %v317
        %v319 = vrot.slane %v302, 4
        %v320 = vsel %vm271, 0.0, %v319
        %v321 = vrot.slane %v306, 4
        %v322 = vsel %vm271, 0.0, %v321
        %v323 = vrot.slane %v314, 4
        %v324 = vsel %vm271, 0.0, %v323
        %v325 = vrot.slane %v318, 4
        %v326 = vsel %vm271, 0.0, %v325
        %v327 = vsel %vm271, %v321, %v302
        %v329 = vunpack.c.l.s4 1983009808
        %v330 = vunpack.c.0.s8 %v329
        %v331 = vperm.slane %v327, %v330
        %v332 = vrot.slane %v322, 4
        %v333 = vsel %vm271, %v332, %v320
        %v335 = vunpack.c.l.s4 1983009808
        %v336 = vunpack.c.0.s8 %v335
        %v337 = vperm.slane %v333, %v336
        %v338 = vsel %vm271, %v325, %v314
        %v340 = vunpack.c.l.s4 1983009808
        %v341 = vunpack.c.0.s8 %v340
        %v342 = vperm.slane %v338, %v341
        %v343 = vrot.slane %v326, 4
        %v344 = vsel %vm271, %v343, %v324
        %v346 = vunpack.c.l.s4 1983009808
        %v347 = vunpack.c.0.s8 %v346
        %v348 = vperm.slane %v344, %v347
        %v349 = vrot.slane %v337, 4
        %v350 = vsel %vm271, %v349, %v331
        %v351 = vrot.slane %v331, 4
        %v352 = vsel %vm271, %v337, %v351
        %v354 = vunpack.c.l.s4 1934713408
        %v355 = vunpack.c.0.s8 %v354
        %v356 = vperm.slane %v350, %v355
        %v358 = vunpack.c.l.s4 1934713408
        %v359 = vunpack.c.0.s8 %v358
        %v360 = vperm.slane %v352, %v359
        %v361 = vrot.slane %v348, 4
        %v362 = vsel %vm271, %v361, %v342
        %v363 = vrot.slane %v342, 4
        %v364 = vsel %vm271, %v348, %v363
        %v366 = vunpack.c.l.s4 1934713408
        %v367 = vunpack.c.0.s8 %v366
        %v368 = vperm.slane %v362, %v367
        %v370 = vunpack.c.l.s4 1934713408
        %v371 = vunpack.c.0.s8 %v370
        %v372 = vperm.slane %v364, %v371
        %v373 = vrot.slane %v368, 4
        %v374 = vsel %vm271, %v373, %v356
        %v375 = vrot.slane %v356, 4
        %v376 = vsel %vm271, %v368, %v375
        %v377 = vrot.slane %v372, 4
        %v378 = vsel %vm271, %v377, %v360
        %v379 = vrot.slane %v360, 4
        %v380 = vsel %vm271, %v372, %v379
        %v381 = vpack.c.bf16 %v374, %v374
        %v382 = vpack.c.bf16 %v376, %v376
        %v383 = vpack.c.bf16 %v378, %v378
        %v384 = vpack.c.bf16 %v380, %v380
        %vm385 = vcmask 60416
        %386 = vst.msk [vmem:[%s221] sm:$0xf] %vm385, %v381
        %387 = vst.msk [vmem:[%s221 + $0x4] sm:$0xf] %vm385, %v382
        %388 = vst.msk [vmem:[%s221 + $0x8] sm:$0xf] %vm385, %v383
        %389 = vst.msk [vmem:[%s221 + $0xc] sm:$0xf] %vm385, %v384
        %s390 = sand.u32 %s113, 1
        %s391 = scalar_lea.sflag [#allocation4], %s390
        %s392 = sand.u32 %s113, 1
        %s393 = smul.addr %s392, 16
        %s394 = scalar_lea.vmem [#allocation7], %s393
        // Predicated region
        $region41: #{tpu_custom_call.1} parent=31 // pred_check
          %p395 = pneg %p123
        $region42: #{tpu_custom_call.1} parent=31 // pred_check_branch
          %397 = sbr.rel (%p395) target = $region44
        $region43: #{tpu_custom_call.1} parent=31 // pred_region
          %399 = vsyncadd %s391, 0
          %s400 = smul.addr %s25, 4
          %s401 = sadd.s32 %s26, %s400
          %s402 = smul.addr %s401, 4
          %s403 = scalar_lea.hbm %s3, %s402
          %s404 = sshll.u32 %s394, 4
          %s405 = int_to_ptr.vmem [resolvable:$true] %s404
          %s406 = sshll.u32 %s403, 4
          %s407 = int_to_ptr.hbm [resolvable:$true] %s406
          %412 = dma.vmem_to_hbm [thread:$0]  %s405, 256, %s407, %s391, 64, 64, 4
        $region44: #{tpu_custom_call.1} parent=31 // pred_fallthru
          _
      $region32: #{tpu_custom_call.1} parent=5 // pred_fallthru
        _
      %p413 = scmp.le.s32.totalorder 2, %s16
      // Predicated region
      $region45: #{tpu_custom_call.1} parent=5 // pred_check
        %p414 = pneg %p413
      $region46: #{tpu_custom_call.1} parent=5 // pred_check_branch
        %416 = sbr.rel (%p414) target = $region48
      $region47: #{tpu_custom_call.1} parent=5 // pred_region
        %s417 = ssub.s32 %s16, 2
        // Predicated region
        $region49: #{tpu_custom_call.1} parent=47 // pred_check
          %p418 = pneg %p129
        $region50: #{tpu_custom_call.1} parent=47 // pred_check_branch
          %420 = sbr.rel (%p418) target = $region52
        $region51: #{tpu_custom_call.1} parent=47 // pred_region
          %s421 = sand.u32 %s114, 1
          %s422 = scalar_lea.sflag [#allocation4], %s421
          %s423 = sand.u32 %s114, 1
          %s424 = smul.addr %s423, 16
          %s425 = scalar_lea.vmem [#allocation7], %s424
          %427 = dma.done %s422, 256
        $region52: #{tpu_custom_call.1} parent=47 // pred_fallthru
          _
      $region48: #{tpu_custom_call.1} parent=5 // pred_fallthru
        _
    $region6: #{tpu_custom_call.1} parent=1 // loop_footer
      %s20 = sadd.s32 1, %s16
    $region7: #{tpu_custom_call.1} parent=1 // loop_footer_branch
      %15 = sbr.rel target = $region3
    $region8: #{tpu_custom_call.1} parent=1 // loop_exit
      _
    %428 = vsyncpa [#allocation3], 1
    %s429 = scalar_lea.sflag [#allocation3], 1
    %430 = vsyncpa %s429, 1
    %431 = vsyncpa [#allocation6], 1
    %432 = vsyncpa [#allocation4], 1
    %s433 = scalar_lea.sflag [#allocation4], 1
    %434 = vsyncpa %s433, 1

</llo_original>
